<compile_context>
chip_gen: v7x
topology: tpu7x:2x2x1
jax: 0.10.0
libtpu: 0.0.40
codegen_flags: <defaults>
</compile_context>

<pallas_src>
import functools

import jax
import jax.numpy as jnp
from jax.experimental import pallas as pl
from jax.experimental.pallas import tpu as pltpu

_LANES = 128
_TARGET_BLOCK_BYTES = 4 * 1024 * 1024   # per-operand block target (2-4 MiB sweet spot)
_MIN_BLOCK_BYTES = 1 * 1024 * 1024      # don't shrink blocks below this to add steps
_SINGLE_BLOCK_BYTES = 6 * 1024 * 1024   # relaxed single-block cap (3 ops x 2 bufs x 6 = 36 MiB)
_VMEM_LIMIT = 48 * 1024 * 1024          # <= v7x 64 MiB/TC, well under v5e/v6e 128 MiB


def _round_up(x, m):
    return ((x + m - 1) // m) * m


def _sublane(dtype):
    return max(8, 32 // jnp.dtype(dtype).itemsize)   # 8 f32, 16 bf16, 32 int8


def _choose_block(candidates, bytes_per_unit, target_bytes, min_bytes):
    """Pick a block length from `candidates` (each divides the full extent).

    Prefer the smallest candidate whose block is still >= min_bytes (maximises
    pipelined grid steps without tiny blocks); otherwise the largest fitting
    candidate; None if nothing fits the target.
    """
    fitting = [c for c in candidates if c * bytes_per_unit <= target_bytes]
    if not fitting:
        return None
    big_enough = [c for c in fitting if c * bytes_per_unit >= min_bytes]
    if big_enough:
        return min(big_enough)
    return max(fitting)


# ---------------------------------------------------------------------------
# Kernel: one tile of flattened samples, per-sample scales broadcast in-kernel.
# Works for both the 3-D (b, rows, 128) layout and the 2-D (b, chw) layout.
# ---------------------------------------------------------------------------
def _ddpm_axpby_kernel(a_ref, b_ref, x0_ref, eta_ref, out_ref):
    out_ref[...] = (a_ref[...] * x0_ref[...]
                    + b_ref[...] * eta_ref[...]).astype(out_ref.dtype)


def _compiler_params(sem):
    return pltpu.CompilerParams(dimension_semantics=sem,
                                vmem_limit_bytes=_VMEM_LIMIT)


# ---------------------------------------------------------------------------
# Fast path A: chw is a multiple of 128 -> (N, rows, 128) view, zero copies.
# ---------------------------------------------------------------------------
def _axpby_aligned(x, eta, a_t, b_t):
    n, chw = x.shape
    dtype = x.dtype
    itemsize = jnp.dtype(dtype).itemsize
    rows = chw // _LANES
    per_sample = chw * itemsize

    x3 = x.reshape(n, rows, _LANES)
    e3 = eta.reshape(n, rows, _LANES)
    a3 = a_t.reshape(n, 1, 1)
    b3 = b_t.reshape(n, 1, 1)

    if per_sample <= _TARGET_BLOCK_BYTES:
        # Fold whole samples into each block; b_blk is a divisor of n (no pad).
        cand = [d for d in range(1, n + 1) if n % d == 0]
        b_blk = _choose_block(cand, per_sample, _TARGET_BLOCK_BYTES, _MIN_BLOCK_BYTES)
        data_spec = pl.BlockSpec((b_blk, rows, _LANES), lambda i: (i, 0, 0))
        scale_spec = pl.BlockSpec((b_blk, 1, 1), lambda i: (i, 0, 0))
        grid = (n // b_blk,)
        sem = ("parallel",)
    else:
        # Huge samples: one sample per batch step, tile rows with an exact divisor.
        sub = _sublane(dtype)
        row_bytes = _LANES * itemsize
        cand = [d for d in range(sub, rows + 1, sub) if rows % d == 0]
        r_blk = _choose_block(cand, row_bytes, _TARGET_BLOCK_BYTES, _MIN_BLOCK_BYTES)
        if r_blk is None:
            return None  # caller falls back to the padded path
        data_spec = pl.BlockSpec((1, r_blk, _LANES), lambda i, j: (i, j, 0))
        scale_spec = pl.BlockSpec((1, 1, 1), lambda i, j: (i, 0, 0))
        grid = (n, rows // r_blk)   # batch outer -> scale re-fetch elided
        sem = ("parallel", "parallel")

    out = pl.pallas_call(
        _ddpm_axpby_kernel,
        out_shape=jax.ShapeDtypeStruct((n, rows, _LANES), dtype),
        grid=grid,
        in_specs=[scale_spec, scale_spec, data_spec, data_spec],
        out_specs=data_spec,
        compiler_params=_compiler_params(sem),
    )(a3, b3, x3, e3)
    return out.reshape(n, chw)


# ---------------------------------------------------------------------------
# Fast path C: ragged chw (not a multiple of 128) -> 2-D (N, chw) layout with
# the block's last dim = full chw (exempt from 128 divisibility); no pad copy.
# ---------------------------------------------------------------------------
def _axpby_ragged(x, eta, a_t, b_t):
    n, chw = x.shape
    dtype = x.dtype
    itemsize = jnp.dtype(dtype).itemsize
    per_sample = chw * itemsize
    sub = _sublane(dtype)

    # b_blk must be a multiple of the sublane count OR equal n (full extent).
    cand = sorted({d for d in range(sub, n + 1, sub) if n % d == 0} | {n})
    b_blk = _choose_block(cand, per_sample, _TARGET_BLOCK_BYTES, _MIN_BLOCK_BYTES)
    if b_blk is None:
        if n * per_sample <= _SINGLE_BLOCK_BYTES:
            b_blk = n            # single block, still comfortably inside VMEM
        else:
            return None          # caller falls back to the padded path

    a2 = a_t.reshape(n, 1)
    b2 = b_t.reshape(n, 1)
    data_spec = pl.BlockSpec((b_blk, chw), lambda i: (i, 0))
    scale_spec = pl.BlockSpec((b_blk, 1), lambda i: (i, 0))

    return pl.pallas_call(
        _ddpm_axpby_kernel,
        out_shape=jax.ShapeDtypeStruct((n, chw), dtype),
        grid=(n // b_blk,),
        in_specs=[scale_spec, scale_spec, data_spec, data_spec],
        out_specs=data_spec,
        compiler_params=_compiler_params(("parallel",)),
    )(a2, b2, x, eta)


# ---------------------------------------------------------------------------
# Fallback path D (rare): pad each sample's flattened pixels to a tile-aligned
# length. Costs extra HBM copies, only used when the fast paths don't apply.
# ---------------------------------------------------------------------------
def _axpby_padded(x, eta, a_t, b_t):
    n, chw = x.shape
    dtype = x.dtype
    itemsize = jnp.dtype(dtype).itemsize
    sub = _sublane(dtype)
    rows = -(-chw // _LANES)
    row_bytes = _LANES * itemsize
    budget_rows = max(sub, (_TARGET_BLOCK_BYTES // row_bytes) // sub * sub)
    r_blk = min(_round_up(rows, sub), budget_rows)
    rows_pad = _round_up(rows, r_blk)
    pad = rows_pad * _LANES - chw

    def prep(arr):
        return jnp.pad(arr, ((0, 0), (0, pad))).reshape(n, rows_pad, _LANES)

    x3, e3 = prep(x), prep(eta)
    a3 = a_t.reshape(n, 1, 1)
    b3 = b_t.reshape(n, 1, 1)
    data_spec = pl.BlockSpec((1, r_blk, _LANES), lambda i, j: (i, j, 0))
    scale_spec = pl.BlockSpec((1, 1, 1), lambda i, j: (i, 0, 0))

    out = pl.pallas_call(
        _ddpm_axpby_kernel,
        out_shape=jax.ShapeDtypeStruct((n, rows_pad, _LANES), dtype),
        grid=(n, rows_pad // r_blk),
        in_specs=[scale_spec, scale_spec, data_spec, data_spec],
        out_specs=data_spec,
        compiler_params=_compiler_params(("parallel", "parallel")),
    )(a3, b3, x3, e3)
    return out.reshape(n, rows_pad * _LANES)[:, :chw]


# ---------------------------------------------------------------------------
# Wrapper: schedule construction + path dispatch. Equivalent of DDPM.forward.
# ---------------------------------------------------------------------------
@functools.partial(jax.jit, static_argnames=("n_steps", "min_beta", "max_beta"))
def ddpm_forward(x0, t, eta, n_steps=200, min_beta=1e-4, max_beta=0.02):
    """noisy = sqrt(alpha_bar[t]) * x0 + sqrt(1 - alpha_bar[t]) * eta."""
    n, c, h, w = x0.shape
    chw = c * h * w

    # Noise schedule (same math as the torch __init__), gathered at t.
    betas = jnp.linspace(min_beta, max_beta, n_steps, dtype=jnp.float32)
    alpha_bars = jnp.cumprod(1.0 - betas)
    # NOTE: t is clamped to [0, n_steps-1]; the PyTorch reference would raise
    # an index error on out-of-range t instead.
    t = jnp.clip(t.astype(jnp.int32), 0, n_steps - 1)
    a_t = jnp.sqrt(alpha_bars)[t]          # (N,) f32
    b_t = jnp.sqrt(1.0 - alpha_bars)[t]    # (N,) f32

    x2 = x0.reshape(n, chw)
    e2 = eta.astype(x0.dtype).reshape(n, chw)

    if chw % _LANES == 0:
        out = _axpby_aligned(x2, e2, a_t, b_t)
    else:
        out = _axpby_ragged(x2, e2, a_t, b_t)
    if out is None:
        out = _axpby_padded(x2, e2, a_t, b_t)
    return out.reshape(n, c, h, w)


# ---------------------------------------------------------------------------
# Demo / correctness check
# ---------------------------------------------------------------------------
if __name__ == "__main__":
    N_STEPS = 200
    key = jax.random.PRNGKey(0)
    kx, ke, kt = jax.random.split(key, 3)

    betas = jnp.linspace(1e-4, 0.02, N_STEPS, dtype=jnp.float32)
    alpha_bars = jnp.cumprod(1.0 - betas)

    def reference(x0, t, eta):
        a_bar = alpha_bars[t].reshape(-1, 1, 1, 1)
        return (jnp.sqrt(a_bar) * x0.astype(jnp.float32)
                + jnp.sqrt(1.0 - a_bar) * eta.astype(jnp.float32))

    # 1) Aligned shape (chw = 1024), f32.
    N, C, H, W = 2, 4, 16, 16
    x0 = jax.random.normal(kx, (N, C, H, W), dtype=jnp.float32)
    eta = jax.random.normal(ke, (N, C, H, W), dtype=jnp.float32)
    t = jax.random.randint(kt, (N,), 0, N_STEPS, dtype=jnp.int32)
    noisy = jax.block_until_ready(ddpm_forward(x0, t, eta, n_steps=N_STEPS))
    assert noisy.shape == (N, C, H, W) and noisy.dtype == x0.dtype
    assert jnp.allclose(noisy, reference(x0, t, eta), atol=1e-6, rtol=1e-6)

    # 2) Ragged MNIST-like shape (the module's default image_chw), f32.
    x0b = jax.random.normal(kx, (3, 1, 28, 28), dtype=jnp.float32)
    etab = jax.random.normal(ke, (3, 1, 28, 28), dtype=jnp.float32)
    tb = jax.random.randint(kt, (3,), 0, N_STEPS, dtype=jnp.int32)
    noisyb = jax.block_until_ready(ddpm_forward(x0b, tb, etab, n_steps=N_STEPS))
    assert jnp.allclose(noisyb, reference(x0b, tb, etab), atol=1e-6, rtol=1e-6)

    # 3) bf16 path (dtype preserved end-to-end, f32 math in-kernel).
    x0c = x0.astype(jnp.bfloat16)
    etac = eta.astype(jnp.bfloat16)
    noisyc = jax.block_until_ready(ddpm_forward(x0c, t, etac, n_steps=N_STEPS))
    assert noisyc.dtype == jnp.bfloat16
    assert jnp.allclose(noisyc.astype(jnp.float32), reference(x0c, t, etac),
                        atol=2e-2, rtol=2e-2)

    # TODO(synk): DDPM.backward wraps an arbitrary user `network` (U-Net) and its
    # feature_extract hook; that external module is out of scope for this kernel.
    print("KERNEL_OK")
</pallas_src>

<mosaic_0001>
module attributes {stable_mosaic.version = 11 : i64} {
  func.func @_ddpm_axpby_kernel(%arg0: i32, %arg1: memref<2x1x1xf32, #tpu.memory_space<vmem>>, %arg2: memref<2x1x1xf32, #tpu.memory_space<vmem>>, %arg3: memref<2x8x128xf32, #tpu.memory_space<vmem>>, %arg4: memref<2x8x128xf32, #tpu.memory_space<vmem>>, %arg5: memref<2x8x128xf32, #tpu.memory_space<vmem>>) attributes {dimension_semantics = [#tpu.dimension_semantics<parallel>], iteration_bounds = array<i64: 1>, scalar_prefetch = 0 : i64, scratch_operands = 0 : i64, tpu.core_type = #tpu.core_type<tc>, window_params = [{transform_indices = @transform_0, window_bounds = array<i64: 2, 1, 1>}, {transform_indices = @transform_1, window_bounds = array<i64: 2, 1, 1>}, {transform_indices = @transform_2, window_bounds = array<i64: 2, 8, 128>}, {transform_indices = @transform_3, window_bounds = array<i64: 2, 8, 128>}, {transform_indices = @transform_4, window_bounds = array<i64: 2, 8, 128>}]} {
    %c0 = arith.constant 0 : index
    %c0_0 = arith.constant 0 : index
    %c0_1 = arith.constant 0 : index
    %0 = vector.load %arg1[%c0, %c0_0, %c0_1] : memref<2x1x1xf32, #tpu.memory_space<vmem>>, vector<2x1x1xf32>
    %c0_2 = arith.constant 0 : index
    %c0_3 = arith.constant 0 : index
    %c0_4 = arith.constant 0 : index
    %1 = vector.load %arg3[%c0_2, %c0_3, %c0_4] : memref<2x8x128xf32, #tpu.memory_space<vmem>>, vector<2x8x128xf32>
    %2 = vector.broadcast %0 : vector<2x1x1xf32> to vector<2x8x128xf32>
    %3 = arith.mulf %2, %1 : vector<2x8x128xf32>
    %c0_5 = arith.constant 0 : index
    %c0_6 = arith.constant 0 : index
    %c0_7 = arith.constant 0 : index
    %4 = vector.load %arg2[%c0_5, %c0_6, %c0_7] : memref<2x1x1xf32, #tpu.memory_space<vmem>>, vector<2x1x1xf32>
    %c0_8 = arith.constant 0 : index
    %c0_9 = arith.constant 0 : index
    %c0_10 = arith.constant 0 : index
    %5 = vector.load %arg4[%c0_8, %c0_9, %c0_10] : memref<2x8x128xf32, #tpu.memory_space<vmem>>, vector<2x8x128xf32>
    %6 = vector.broadcast %4 : vector<2x1x1xf32> to vector<2x8x128xf32>
    %7 = arith.mulf %6, %5 : vector<2x8x128xf32>
    %8 = arith.addf %3, %7 : vector<2x8x128xf32>
    %c0_11 = arith.constant 0 : index
    %c0_12 = arith.constant 0 : index
    %c0_13 = arith.constant 0 : index
    %9 = vector.load %arg5[%c0_11, %c0_12, %c0_13] : memref<2x8x128xf32, #tpu.memory_space<vmem>>, vector<2x8x128xf32>
    tpu.vector_store %arg5[%c0_11, %c0_12, %c0_13], %8 {strides = array<i32>} : memref<2x8x128xf32, #tpu.memory_space<vmem>>, vector<2x8x128xf32>,
    return
  }
  func.func @transform_0(%arg0: i32) -> (i32, i32, i32) {
    %c0_i32 = arith.constant 0 : i32
    %c0_i32_0 = arith.constant 0 : i32
    %c0_i32_1 = arith.constant 0 : i32
    return %arg0, %c0_i32, %c0_i32_0 : i32, i32, i32
  }
  func.func @transform_1(%arg0: i32) -> (i32, i32, i32) {
    %c0_i32 = arith.constant 0 : i32
    %c0_i32_0 = arith.constant 0 : i32
    %c0_i32_1 = arith.constant 0 : i32
    return %arg0, %c0_i32, %c0_i32_0 : i32, i32, i32
  }
  func.func @transform_2(%arg0: i32) -> (i32, i32, i32) {
    %c0_i32 = arith.constant 0 : i32
    %c0_i32_0 = arith.constant 0 : i32
    %c0_i32_1 = arith.constant 0 : i32
    return %arg0, %c0_i32, %c0_i32_0 : i32, i32, i32
  }
  func.func @transform_3(%arg0: i32) -> (i32, i32, i32) {
    %c0_i32 = arith.constant 0 : i32
    %c0_i32_0 = arith.constant 0 : i32
    %c0_i32_1 = arith.constant 0 : i32
    return %arg0, %c0_i32, %c0_i32_0 : i32, i32, i32
  }
  func.func @transform_4(%arg0: i32) -> (i32, i32, i32) {
    %c0_i32 = arith.constant 0 : i32
    %c0_i32_0 = arith.constant 0 : i32
    %c0_i32_1 = arith.constant 0 : i32
    return %arg0, %c0_i32, %c0_i32_0 : i32, i32, i32
  }
}

</mosaic_0001>

<llo_original>
// kernel: ddpm_forward.1
$region0: #{ddpm_forward.1}
  #allocation0 [shape = 'u32[]', space=smem, size = 0x4, offset = 0x4, fixed_abs, tag = 'smem constant byte address 0x4 - core index']
  #allocation1 [shape = 'u32[144,128]{1,0:T(1,128)}', space=vmem, size = 0x12000, scoped, tag = 'internal scratch']
  %s0 = inlined_call_operand.vmem [shape: f32[2,1,1], index: 0, kind: input, shape index: {}]
  %s1 = inlined_call_operand.vmem [shape: f32[2,1,1], index: 1, kind: input, shape index: {}]
  %s2 = inlined_call_operand.vmem [shape: f32[2,8,128], index: 2, kind: input, shape index: {}]
  %s3 = inlined_call_operand.vmem [shape: f32[2,8,128], index: 3, kind: input, shape index: {}]
  %s4 = inlined_call_operand.vmem [shape: f32[2,8,128], index: 4, kind: output, shape index: {}]
  %s5 = sld [smem:[#allocation0]]
  $region26: #{ddpm_forward.1} parent=0
    _
  %s7 = ssub.s32 1, %s5
  %s8 = scalar_select 0, %s7, %s5
  // Predicated region
  $region2: #{ddpm_forward.1} parent=0 // pred_check
    _
  $region3: #{ddpm_forward.1} parent=0 // pred_check_branch
    %10 = sbr.rel (0) target = $region5
  $region4: #{ddpm_forward.1} parent=0 // pred_region
    _
  $region5: #{ddpm_forward.1} parent=0 // pred_fallthru
    _
  // Predicated region
  $region6: #{ddpm_forward.1} parent=0 // pred_check
    _
  $region7: #{ddpm_forward.1} parent=0 // pred_check_branch
    %12 = sbr.rel (0) target = $region9
  $region8: #{ddpm_forward.1} parent=0 // pred_region
    _
  $region9: #{ddpm_forward.1} parent=0 // pred_fallthru
    _
  // Predicated region
  $region10: #{ddpm_forward.1} parent=0 // pred_check
    _
  $region11: #{ddpm_forward.1} parent=0 // pred_check_branch
    %14 = sbr.rel (0) target = $region13
  $region12: #{ddpm_forward.1} parent=0 // pred_region
    _
  $region13: #{ddpm_forward.1} parent=0 // pred_fallthru
    _
  // Predicated region
  $region14: #{ddpm_forward.1} parent=0 // pred_check
    _
  $region15: #{ddpm_forward.1} parent=0 // pred_check_branch
    %16 = sbr.rel (0) target = $region17
  $region16: #{ddpm_forward.1} parent=0 // pred_region
    _
  $region17: #{ddpm_forward.1} parent=0 // pred_fallthru
    _
  %v17 = vld [vmem:[%s0] sm:$0x1]
  %v18 = vld [vmem:[%s0 + $0x1] sm:$0x1]
  %v19 = vld [vmem:[%s2] sm:$0xff]
  %v20 = vld [vmem:[%s2 + $0x8] sm:$0xff]
  %v23 = vlaneseq
  %v24 = vshrl.u32 %v23, 7
  %v25 = vsub.s32 0, %v24
  %v26 = vrot.slane %v17, %v25
  %v27 = vlaneseq
  %v28 = vshrl.u32 %v27, 7
  %v29 = vsub.s32 0, %v28
  %v30 = vrot.slane %v18, %v29
  %31 = vset.pattern.permute.xlu0 0
  %32 = vperm.xlu0 %31, %v26
  %v33 = vpop.permute.xlu0 %32
  %35 = vset.pattern.permute.xlu0 0
  %36 = vperm.xlu0 %35, %v30
  %v37 = vpop.permute.xlu0 %36
  %v39 = vmul.f32 %v33, %v19
  %v40 = vmul.f32 %v37, %v20
  %v41 = vld [vmem:[%s1] sm:$0x1]
  %v42 = vld [vmem:[%s1 + $0x1] sm:$0x1]
  %v43 = vld [vmem:[%s3] sm:$0xff]
  %v44 = vld [vmem:[%s3 + $0x8] sm:$0xff]
  %v47 = vlaneseq
  %v48 = vshrl.u32 %v47, 7
  %v49 = vsub.s32 0, %v48
  %v50 = vrot.slane %v41, %v49
  %v51 = vlaneseq
  %v52 = vshrl.u32 %v51, 7
  %v53 = vsub.s32 0, %v52
  %v54 = vrot.slane %v42, %v53
  %55 = vset.pattern.permute.xlu0 0
  %56 = vperm.xlu0 %55, %v50
  %v57 = vpop.permute.xlu0 %56
  %59 = vset.pattern.permute.xlu0 0
  %60 = vperm.xlu0 %59, %v54
  %v61 = vpop.permute.xlu0 %60
  %v63 = vmul.f32 %v57, %v43
  %v64 = vmul.f32 %v61, %v44
  %v65 = vadd.f32 %v39, %v63
  %v66 = vadd.f32 %v40, %v64
  %67 = vst [vmem:[%s4] sm:$0xff] %v65
  %68 = vst [vmem:[%s4 + $0x8] sm:$0xff] %v66
  // Predicated region
  $region18: #{ddpm_forward.1} parent=0 // pred_check
    _
  $region19: #{ddpm_forward.1} parent=0 // pred_check_branch
    %70 = sbr.rel (0) target = $region21
  $region20: #{ddpm_forward.1} parent=0 // pred_region
    _
  $region21: #{ddpm_forward.1} parent=0 // pred_fallthru
    _
  // Predicated region
  $region22: #{ddpm_forward.1} parent=0 // pred_check
    _
  $region23: #{ddpm_forward.1} parent=0 // pred_check_branch
    %72 = sbr.rel (0) target = $region25
  $region24: #{ddpm_forward.1} parent=0 // pred_region
    _
  $region25: #{ddpm_forward.1} parent=0 // pred_fallthru
    _

</llo_original>
